<compile_context>
chip_gen: v7x
topology: tpu7x:2x2x1
jax: 0.10.0
libtpu: 0.0.40
codegen_flags: <defaults>
</compile_context>

<pallas_src>
from functools import partial, lru_cache

import numpy as np
import jax
import jax.numpy as jnp
from jax.experimental import pallas as pl
from jax.experimental.pallas import tpu as pltpu


def _pad_to(n, m):
    return max(((n + m - 1) // m) * m, m)


def _pick_vmem_limit():
    # v7x has only 64 MiB physical VMEM per TC -> keep a conservative 32 MiB cap;
    # v5e/v6e (128 MiB parts) get 64 MiB so large-K layers can use bigger tiles.
    try:
        kind = jax.devices()[0].device_kind.lower()
    except Exception:
        kind = ''
    return (32 if 'v7' in kind else 64) * 1024 * 1024


_VMEM_LIMIT = _pick_vmem_limit()


@lru_cache(maxsize=None)
def _ones(n):
    return jnp.ones((n,), jnp.float32)


@lru_cache(maxsize=None)
def _zeros(n):
    return jnp.zeros((n,), jnp.float32)


def _apply_act(y, act):
    if act == 'relu':
        return jnp.maximum(y, 0.0)
    if act == 'lrelu':
        return jnp.where(y >= 0.0, y, 0.2 * y)
    if act == 'sigmoid':
        return jax.nn.sigmoid(y)
    if act == 'tanh':
        return jnp.tanh(y)
    return y


# --------------------------------------------------------------------------- #
# Fused tiled matmul Pallas kernels:  out = act(A@B * scale + bias) [+ residual]
#   A: (Mp,Kp) bf16   B: (Kp,Np) bf16   scale/bias: (1,Np) f32
#   f32 accumulation, bf16 output.
# --------------------------------------------------------------------------- #
def _mm_fused_single_kernel(*refs, act, has_res):
    """Single K-step: no VMEM accumulator round-trip, 2-D (parallel,parallel) grid."""
    if has_res:
        a_ref, b_ref, s_ref, c_ref, r_ref, o_ref = refs
    else:
        a_ref, b_ref, s_ref, c_ref, o_ref = refs
        r_ref = None
    acc = jnp.dot(a_ref[...], b_ref[...], preferred_element_type=jnp.float32)
    y = _apply_act(acc * s_ref[...] + c_ref[...], act)
    if has_res:
        y = y + r_ref[...].astype(jnp.float32)
    o_ref[...] = y.astype(o_ref.dtype)


def _mm_fused_multi_kernel(*refs, act, has_res):
    """Multi K-step: resident f32 VMEM accumulator, pl.when init / flush."""
    if has_res:
        a_ref, b_ref, s_ref, c_ref, r_ref, o_ref, acc_ref = refs
    else:
        a_ref, b_ref, s_ref, c_ref, o_ref, acc_ref = refs
        r_ref = None
    k = pl.program_id(2)

    @pl.when(k == 0)
    def _init():
        acc_ref[...] = jnp.zeros_like(acc_ref)

    acc_ref[...] += jnp.dot(a_ref[...], b_ref[...],
                            preferred_element_type=jnp.float32)

    @pl.when(k == pl.num_programs(2) - 1)
    def _finish():
        y = _apply_act(acc_ref[...] * s_ref[...] + c_ref[...], act)
        if has_res:
            y = y + r_ref[...].astype(jnp.float32)
        o_ref[...] = y.astype(o_ref.dtype)


def _im2col_nhwc(x, kh, kw, stride):
    """(N,Hp,Wp,C) -> ((N*Ho*Wo, C*kh*kw), Ho, Wo); torch (C, kh, kw) column order."""
    N, Hp, Wp, C = x.shape
    Ho = (Hp - kh) // stride + 1
    Wo = (Wp - kw) // stride + 1
    cols = []
    for i in range(kh):
        for j in range(kw):
            cols.append(x[:, i:i + (Ho - 1) * stride + 1:stride,
                           j:j + (Wo - 1) * stride + 1:stride, :])
    A = jnp.stack(cols, axis=-1).reshape(N * Ho * Wo, C * kh * kw)
    return A, Ho, Wo


def _select_tiles(M, Kp, Np):
    if M >= 256:
        Mp, tm = pl.cdiv(M, 256) * 256, 256
        if Mp - M > 64:                      # heavy M-padding waste -> finer M tiles
            Mp, tm = pl.cdiv(M, 128) * 128, 128
    else:
        Mp = _pad_to(M, 16)                  # >=16 sublanes keeps bf16 tiles native
        tm = Mp
    tn = 256 if Np % 256 == 0 else 128
    # v7x megacore: make sure the parallel (i, j) grid has >= 2 blocks when cheap.
    if (Mp // tm) * (Np // tn) == 1:
        if Np >= 256:
            tn = 128
        elif Mp >= 256:
            tm = 128
    if Kp <= 2048:
        tk = Kp
    else:
        tk = 128
        for cand in (2048, 1024, 512, 256):
            if Kp % cand == 0:
                tk = cand
                break
    return Mp, tm, tn, tk


@partial(jax.jit, static_argnames=('kh', 'kw', 'stride', 'padding', 'pad_mode', 'act'))
def _conv_pallas(x, wp, s, b, ps, pt, res, *, kh, kw, stride, padding, pad_mode, act):
    """Fused conv: optional pre-BN+ReLU, bf16 pad + im2col, tiled MXU matmul with a
    per-channel scale/bias/activation(+residual) epilogue.  bf16 out, f32 accumulate."""
    N, H, W, C = x.shape
    O = s.shape[0]
    x = x.astype(jnp.bfloat16)                # cast BEFORE pad/im2col: halves HBM traffic
    if ps is not None:                        # folded eval-mode BN + ReLU (pre-activation)
        x = jnp.maximum(x * ps.astype(jnp.bfloat16) + pt.astype(jnp.bfloat16), 0.0)
    if padding:
        mode = 'reflect' if pad_mode == 'reflect' else 'constant'
        x = jnp.pad(x, ((0, 0), (padding, padding), (padding, padding), (0, 0)), mode=mode)
    A, Ho, Wo = _im2col_nhwc(x, kh, kw, stride)
    # TODO(synk): im2col is still materialized in HBM; in-kernel 3x3 tap accumulation
    # (halo BlockSpec) would remove the 9x activation read amplification (biggest on v5e).
    M, K = A.shape
    Kp, Np = wp.shape
    Mp, tm, tn, tk = _select_tiles(M, Kp, Np)

    A = jnp.pad(A, ((0, Mp - M), (0, Kp - K)))
    sp = jnp.pad(s, (0, Np - O)).reshape(1, Np)
    cp = jnp.pad(b, (0, Np - O)).reshape(1, Np)
    has_res = res is not None

    args = [A, wp, sp, cp]
    if has_res:
        r2 = jnp.pad(res.astype(jnp.bfloat16).reshape(M, O),
                     ((0, Mp - M), (0, Np - O)))
        args.append(r2)

    cost = pl.CostEstimate(
        flops=2 * Mp * Np * Kp,
        transcendentals=Mp * Np if act in ('sigmoid', 'tanh') else 0,
        bytes_accessed=2 * (Mp * Kp + Kp * Np + Mp * Np
                            + (Mp * Np if has_res else 0)) + 8 * Np)

    if Kp == tk:
        # single K step -> skip accumulator zero-fill / read-modify-write entirely
        in_specs = [pl.BlockSpec((tm, Kp), lambda i, j: (i, 0)),
                    pl.BlockSpec((Kp, tn), lambda i, j: (0, j)),
                    pl.BlockSpec((1, tn), lambda i, j: (0, j)),
                    pl.BlockSpec((1, tn), lambda i, j: (0, j))]
        if has_res:
            in_specs.append(pl.BlockSpec((tm, tn), lambda i, j: (i, j)))
        y = pl.pallas_call(
            partial(_mm_fused_single_kernel, act=act, has_res=has_res),
            out_shape=jax.ShapeDtypeStruct((Mp, Np), jnp.bfloat16),
            grid=(Mp // tm, Np // tn),
            in_specs=in_specs,
            out_specs=pl.BlockSpec((tm, tn), lambda i, j: (i, j)),
            compiler_params=pltpu.CompilerParams(
                dimension_semantics=("parallel", "parallel"),
                vmem_limit_bytes=_VMEM_LIMIT),
            cost_estimate=cost,
        )(*args)
    else:
        in_specs = [pl.BlockSpec((tm, tk), lambda i, j, k: (i, k)),
                    pl.BlockSpec((tk, tn), lambda i, j, k: (k, j)),
                    pl.BlockSpec((1, tn), lambda i, j, k: (0, j)),
                    pl.BlockSpec((1, tn), lambda i, j, k: (0, j))]
        if has_res:
            in_specs.append(pl.BlockSpec((tm, tn), lambda i, j, k: (i, j)))
        y = pl.pallas_call(
            partial(_mm_fused_multi_kernel, act=act, has_res=has_res),
            out_shape=jax.ShapeDtypeStruct((Mp, Np), jnp.bfloat16),
            grid=(Mp // tm, Np // tn, Kp // tk),
            in_specs=in_specs,
            out_specs=pl.BlockSpec((tm, tn), lambda i, j, k: (i, j)),
            scratch_shapes=[pltpu.VMEM((tm, tn), jnp.float32)],
            compiler_params=pltpu.CompilerParams(
                dimension_semantics=("parallel", "parallel", "arbitrary"),
                vmem_limit_bytes=_VMEM_LIMIT),
            cost_estimate=cost,
        )(*args)
    # padded rows/cols (which went through the epilogue activation) are sliced off here
    return y[:M, :O].reshape(N, Ho, Wo, O)


@partial(jax.jit, static_argnames=('kh', 'kw', 'stride', 'padding', 'pad_mode', 'act'))
def _conv_xla(x, w4, s, b, ps, pt, res, *, kh, kw, stride, padding, pad_mode, act):
    """Tiny-conv fallback (M<8 or O<8): lane-1/short outputs stay on XLA."""
    C, _, _, O = w4.shape
    x = x.astype(jnp.float32)
    if ps is not None:
        x = jnp.maximum(x * ps + pt, 0.0)
    if padding:
        mode = 'reflect' if pad_mode == 'reflect' else 'constant'
        x = jnp.pad(x, ((0, 0), (padding, padding), (padding, padding), (0, 0)), mode=mode)
    A, Ho, Wo = _im2col_nhwc(x, kh, kw, stride)
    N = x.shape[0]
    y = _apply_act((A @ w4.reshape(C * kh * kw, O)) * s + b, act)
    if res is not None:
        y = y + res.astype(jnp.float32).reshape(y.shape)
    return y.reshape(N, Ho, Wo, O)


def conv2d(x, w, *, stride=1, padding=0, pad_mode='zeros', act='none',
           scale=None, bias=None, pre=None, residual=None):
    """y = act( conv( relu(x*pre_s + pre_t) ) * scale + bias ) [+ residual]  (NHWC)."""
    C, kh, kw, O = w['w4'].shape                 # static metadata comes from the shape
    s = scale if scale is not None else _ones(O)
    b = bias if bias is not None else _zeros(O)
    ps, pt = pre if pre is not None else (None, None)
    N, H, W_, _ = x.shape
    Ho = (H + 2 * padding - kh) // stride + 1
    Wo = (W_ + 2 * padding - kw) // stride + 1
    if N * Ho * Wo >= 8 and O >= 8:
        return _conv_pallas(x, w['wp'], s, b, ps, pt, residual,
                            kh=kh, kw=kw, stride=stride, padding=padding,
                            pad_mode=pad_mode, act=act)
    return _conv_xla(x, w['w4'], s, b, ps, pt, residual,
                     kh=kh, kw=kw, stride=stride, padding=padding,
                     pad_mode=pad_mode, act=act)


# --------------------------------------------------------------------------- #
# XLA glue (pooling windows, resizes, pixel (un)shuffle, SE gating)
# --------------------------------------------------------------------------- #
def avg_pool2d(x, k):
    N, H, W, C = x.shape
    y = x.reshape(N, H // k, k, W // k, k, C).mean(axis=(2, 4), dtype=jnp.float32)
    return y.astype(x.dtype)


def max_pool_3x3_s2_p1(x):
    init = jnp.asarray(-jnp.inf, dtype=x.dtype)
    return jax.lax.reduce_window(
        x, init, jax.lax.max,
        window_dimensions=(1, 3, 3, 1), window_strides=(1, 2, 2, 1),
        padding=((0, 0), (1, 1), (1, 1), (0, 0)))


def upsample_bilinear(x, hw):
    N, H, W, C = x.shape
    return jax.image.resize(x, (N, hw[0], hw[1], C), method='bilinear')


def pixel_unshuffle(x, r):
    N, H, W, C = x.shape
    x = x.reshape(N, H // r, r, W // r, r, C)
    x = jnp.transpose(x, (0, 1, 3, 5, 2, 4))
    return x.reshape(N, H // r, W // r, C * r * r)


def pixel_shuffle(x, r):
    N, H, W, C = x.shape
    c = C // (r * r)
    x = x.reshape(N, H, W, c, r, r)
    x = jnp.transpose(x, (0, 1, 4, 2, 5, 3))
    return x.reshape(N, H * r, W * r, c)


@jax.jit
def _se_impl(x, w1, w2):
    y = jnp.mean(x, axis=(1, 2), dtype=jnp.float32)      # global average pool (N, C)
    h = jnp.maximum(y @ w1.T, 0.0)
    g = jax.nn.sigmoid(h @ w2.T)
    return x * g.astype(x.dtype)[:, None, None, :]


def se_layer(x, p):
    return _se_impl(x, p['w1'], p['w2'])


# --------------------------------------------------------------------------- #
# Parameters (deterministic, pre-packed/padded/bf16-cast once at build time)
# --------------------------------------------------------------------------- #
def pack_conv_weight(w_np):
    """(O, Cin, kh, kw) torch-layout -> bf16 padded (Kp,Np) for the MXU kernel
    + f32 (C,kh,kw,O) (shape metadata & tiny-conv XLA path)."""
    O, C, kh, kw = w_np.shape
    K = C * kh * kw
    w2d = w_np.reshape(O, K).T.astype(np.float32)          # (K, O), torch (C,kh,kw) col order
    Kp, Np = _pad_to(K, 128), _pad_to(O, 128)
    wpad = np.zeros((Kp, Np), np.float32)
    wpad[:K, :O] = w2d
    return dict(w4=jnp.asarray(w2d.reshape(C, kh, kw, O)),
                wp=jnp.asarray(wpad).astype(jnp.bfloat16))


class ParamGen:
    def __init__(self, seed=0):
        self.rng = np.random.RandomState(seed)

    def conv(self, cout, cin, k):
        w = self.rng.normal(0.0, 1.0 / np.sqrt(cin * k * k), (cout, cin, k, k))
        return pack_conv_weight(w.astype(np.float32))

    def linear(self, cout, cin):
        return jnp.asarray(self.rng.normal(0.0, 1.0 / np.sqrt(cin), (cout, cin)), jnp.float32)

    def bias(self, c):
        return jnp.asarray(self.rng.normal(0.0, 0.01, (c,)), jnp.float32)

    def bn(self, c, eps=1e-5):
        gamma = np.ones((c,), np.float32)
        beta = np.zeros((c,), np.float32)
        mean = np.zeros((c,), np.float32)
        var = np.ones((c,), np.float32)
        scale = gamma / np.sqrt(var + eps)          # eval-mode BN folded to affine
        shift = beta - mean * scale
        return (jnp.asarray(scale), jnp.asarray(shift))


# --------------------------------------------------------------------------- #
# Modules
# --------------------------------------------------------------------------- #
def make_se(pg, c, r=16):
    return dict(w1=pg.linear(c // r, c), w2=pg.linear(c, c // r))


def make_residual(pg, c):
    return dict(w1=pg.conv(c, c, 3), w2=pg.conv(c, c, 3))


def residual_block(x, p):
    x1 = conv2d(x, p['w1'], padding=1, act='relu')
    return conv2d(x1, p['w2'], padding=1, residual=x)   # residual add fused in epilogue


def make_bottleneck(pg, inp, outp):
    it = outp * 4
    return dict(
        bn1=pg.bn(inp), conv1=pg.conv(32, inp, 3),
        bn2=pg.bn(inp + 32), conv2=pg.conv(32, inp + 32, 3),
        bn3=pg.bn(inp + 64), conv3=pg.conv(32, inp + 64, 3),
        bn4=pg.bn(inp + 96), conv4=pg.conv(32, inp + 96, 3),
        bn5=pg.bn(inp + 128), conv5=pg.conv(32, inp + 128, 3),
        bn6=pg.bn(inp + 160), conv6=pg.conv(it, inp + 160, 1),
        bn7=pg.bn(it), conv7=pg.conv(outp, it, 3))


def bottleneck_decoder_block(x, p):
    out1 = conv2d(x, p['conv1'], padding=1, pre=p['bn1'])
    o1 = jnp.concatenate([x, out1], -1)
    out2 = conv2d(o1, p['conv2'], padding=1, pre=p['bn2'])
    o2 = jnp.concatenate([o1, out2], -1)
    out3 = conv2d(o2, p['conv3'], padding=1, pre=p['bn3'])
    o3 = jnp.concatenate([o2, out3], -1)
    out4 = conv2d(o3, p['conv4'], padding=1, pre=p['bn4'])
    o4 = jnp.concatenate([o3, out4], -1)
    out5 = conv2d(o4, p['conv5'], padding=1, pre=p['bn5'])
    o5 = jnp.concatenate([o4, out5], -1)
    # bn7+relu folded into conv6's epilogue (out6 only feeds bn7)
    out6 = conv2d(o5, p['conv6'], padding=0, pre=p['bn6'],
                  scale=p['bn7'][0], bias=p['bn7'][1], act='relu')
    out = conv2d(out6, p['conv7'], padding=1)
    return jnp.concatenate([x, out], -1)


def make_transition(pg, inp, outp):
    # ConvTranspose2d with k=1,s=1,p=0 is equivalent to a 1x1 conv.
    return dict(bn=pg.bn(inp), conv=pg.conv(outp, inp, 1))


def transition_block(x, p):
    out = conv2d(x, p['conv'], padding=0, pre=p['bn'])
    N, H, W, C = out.shape
    return upsample_bilinear(out, (2 * H, 2 * W))


# ---- DenseNet121 encoder (architecture reproduced; weights random) ---------- #
def make_dense_layer(pg, cin, growth=32, bn_size=4):
    return dict(norm1=pg.bn(cin), conv1=pg.conv(bn_size * growth, cin, 1),
                norm2=pg.bn(bn_size * growth), conv2=pg.conv(growth, bn_size * growth, 3))


def dense_layer(x, p):
    # norm1+relu as pre-activation, norm2+relu folded into conv1's epilogue
    y = conv2d(x, p['conv1'], pre=p['norm1'],
               scale=p['norm2'][0], bias=p['norm2'][1], act='relu')
    y = conv2d(y, p['conv2'], padding=1)
    return jnp.concatenate([x, y], -1)


def make_dense_block(pg, cin, nlayers, growth=32):
    return [make_dense_layer(pg, cin + i * growth, growth) for i in range(nlayers)]


def dense_block(x, layers):
    for p in layers:
        x = dense_layer(x, p)
    return x


def make_densenet_transition(pg, cin):
    return dict(norm=pg.bn(cin), conv=pg.conv(cin // 2, cin, 1))


def densenet_transition(x, p):
    y = conv2d(x, p['conv'], padding=0, pre=p['norm'])
    return avg_pool2d(y, 2)


# ---- multi_scale front end --------------------------------------------------- #
def make_conv2d_layer(pg, cin, cout, k):
    return dict(w=pg.conv(cout, cin, k), b=pg.bias(cout))


def conv2d_layer(x, p, stride=1, padding=0, pad_type='reflect', act='lrelu'):
    # TODO(synk): Conv2dLayer definition not provided; reflect pad + conv(bias) +
    # LeakyReLU(0.2) with norm='none' is the standard implementation assumed here.
    return conv2d(x, p['w'], stride=stride, padding=padding,
                  pad_mode=('reflect' if pad_type == 'reflect' else 'zeros'),
                  bias=p['b'], act=act)


def make_rdb(pg, cin, g):
    return dict(c1=make_conv2d_layer(pg, cin, g, 3),
                c2=make_conv2d_layer(pg, cin + g, g, 3),
                c3=make_conv2d_layer(pg, cin + 2 * g, g, 3),
                c4=make_conv2d_layer(pg, cin + 3 * g, g, 3),
                c5=make_conv2d_layer(pg, cin + 4 * g, cin, 3))


def rdb_5c(x, p, pad_type='reflect'):
    # TODO(synk): ResidualDenseBlock_5C definition not provided; ESRGAN-style RDB
    # (lrelu on conv1-4, linear conv5, residual scaling 0.2) is used.
    x1 = conv2d_layer(x, p['c1'], 1, 1, pad_type)
    x2 = conv2d_layer(jnp.concatenate([x, x1], -1), p['c2'], 1, 1, pad_type)
    x3 = conv2d_layer(jnp.concatenate([x, x1, x2], -1), p['c3'], 1, 1, pad_type)
    x4 = conv2d_layer(jnp.concatenate([x, x1, x2, x3], -1), p['c4'], 1, 1, pad_type)
    cin = x.shape[-1]
    # 0.2*conv5(...) + x fused into the conv epilogue (scale=0.2, bias=0.2*b, +residual)
    return conv2d(jnp.concatenate([x, x1, x2, x3, x4], -1), p['c5']['w'],
                  padding=1, pad_mode=('reflect' if pad_type == 'reflect' else 'zeros'),
                  scale=jnp.full((cin,), 0.2, jnp.float32),
                  bias=0.2 * p['c5']['b'], residual=x)


def make_global_block(pg, c, reduction=4):
    # TODO(synk): GlobalBlock definition not provided; implemented as an SE-style
    # global-context gate with the given reduction.
    return dict(w1=pg.linear(c // reduction, c), w2=pg.linear(c, c // reduction))


def make_multi_scale(pg, in_channels=8, sc=16):
    return dict(
        top1=make_conv2d_layer(pg, in_channels * 64, sc * 8, 3),
        top21=make_rdb(pg, sc * 8, sc * 4),
        top22=make_global_block(pg, sc * 8, 4),
        top3=make_conv2d_layer(pg, sc * 8, sc * 8, 1),
        mid1=make_conv2d_layer(pg, in_channels * 16, sc * 4, 3),
        mid2=make_conv2d_layer(pg, int(sc * (4 + 8 / 4)), sc * 4, 3),
        mid31=make_rdb(pg, sc * 4, sc * 2),
        mid32=make_global_block(pg, sc * 4, 4),
        mid4=make_conv2d_layer(pg, sc * 4, sc * 4, 3),
        bot1=make_conv2d_layer(pg, in_channels * 4, sc * 2, 3),
        bot2=make_conv2d_layer(pg, int(sc * (2 + 4 / 4)), sc * 2, 3),
        bot31=make_rdb(pg, sc * 2, sc),
        bot32=make_rdb(pg, sc * 2, sc),
        bot33=make_global_block(pg, sc * 2, 4),
        bot4=make_conv2d_layer(pg, sc * 2, sc * 2, 3))


def multi_scale_fwd(x, p):
    x1 = pixel_unshuffle(x, 2)
    x2 = pixel_unshuffle(x, 4)
    x3 = pixel_unshuffle(x, 8)
    x3 = conv2d_layer(x3, p['top1'], 1, 1)
    x3 = rdb_5c(x3, p['top21'])
    x3 = se_layer(x3, p['top22'])
    x3 = conv2d_layer(x3, p['top3'], 1, 0)
    x3 = pixel_shuffle(x3, 2)
    x2 = conv2d_layer(x2, p['mid1'], 1, 1)
    x2 = jnp.concatenate([x2, x3], -1)
    x2 = conv2d_layer(x2, p['mid2'], 1, 1)
    x2 = rdb_5c(x2, p['mid31'])
    x2 = se_layer(x2, p['mid32'])
    x2 = conv2d_layer(x2, p['mid4'], 1, 1)
    x2 = pixel_shuffle(x2, 2)
    x1 = conv2d_layer(x1, p['bot1'], 1, 1)
    x1 = jnp.concatenate([x1, x2], -1)
    x1 = conv2d_layer(x1, p['bot2'], 1, 1)
    x1 = rdb_5c(x1, p['bot31'])
    x1 = rdb_5c(x1, p['bot32'])
    x1 = se_layer(x1, p['bot33'])
    x1 = conv2d_layer(x1, p['bot4'], 1, 1)
    return pixel_shuffle(x1, 2)


# ---- light estimation stub --------------------------------------------------- #
def make_light(pg):
    # TODO(synk): le.le() is not provided; channel/spatial math of SEDenseDecoder
    # requires relu2_2 to be 256 channels at H/16, so a stride-2 conv stack stands in.
    return dict(c1=dict(w=pg.conv(64, 3, 3), b=pg.bias(64)),
                c2=dict(w=pg.conv(128, 64, 3), b=pg.bias(128)),
                c3=dict(w=pg.conv(256, 128, 3), b=pg.bias(256)),
                c4=dict(w=pg.conv(256, 256, 3), b=pg.bias(256)))


def light_estimation_relu2_2(g, p):
    y = g
    for name in ('c1', 'c2', 'c3', 'c4'):
        y = conv2d(y, p[name]['w'], bias=p[name]['b'], stride=2, padding=1, act='relu')
    return y


# ---- SEDenseDecoder ----------------------------------------------------------- #
def make_decoder(pg):
    return dict(
        se5=make_se(pg, 640), db5=make_bottleneck(pg, 640, 256), t5=make_transition(pg, 896, 128),
        r51=make_residual(pg, 128), r52=make_residual(pg, 128),
        se6=make_se(pg, 256), db6=make_bottleneck(pg, 256, 128), t6=make_transition(pg, 384, 64),
        r61=make_residual(pg, 64), r62=make_residual(pg, 64),
        db7=make_bottleneck(pg, 64, 64), t7=make_transition(pg, 128, 32),
        r71=make_residual(pg, 32), r72=make_residual(pg, 32),
        db8=make_bottleneck(pg, 32, 32), t8=make_transition(pg, 64, 16),
        r81=make_residual(pg, 16), r82=make_residual(pg, 16),
        se_refin=make_se(pg, 20, 3),
        conv_refin=dict(w=pg.conv(20, 20, 3), b=pg.bias(20)),
        conv1010=dict(w=pg.conv(1, 20, 1), b=pg.bias(1)),
        conv1020=dict(w=pg.conv(1, 20, 1), b=pg.bias(1)),
        conv1030=dict(w=pg.conv(1, 20, 1), b=pg.bias(1)),
        conv1040=dict(w=pg.conv(1, 20, 1), b=pg.bias(1)),
        refine3=dict(w=pg.conv(3, 24, 3), b=pg.bias(3)))


def se_dense_decoder(p, x, x1, x2, g_lighting, x4, depth, final_act='none'):
    x42 = jnp.concatenate([x4, x2, g_lighting], -1)
    x5 = transition_block(bottleneck_decoder_block(se_layer(x42, p['se5']), p['db5']), p['t5'])
    x5 = residual_block(residual_block(x5, p['r51']), p['r52'])
    x52 = jnp.concatenate([x5, x1], -1)
    x6 = transition_block(bottleneck_decoder_block(se_layer(x52, p['se6']), p['db6']), p['t6'])
    x6 = residual_block(residual_block(x6, p['r61']), p['r62'])
    x7 = transition_block(bottleneck_decoder_block(x6, p['db7']), p['t7'])
    x7 = residual_block(residual_block(x7, p['r71']), p['r72'])
    x8 = transition_block(bottleneck_decoder_block(x7, p['db8']), p['t8'])
    x8 = residual_block(residual_block(x8, p['r81']), p['r82'])
    x8 = jnp.concatenate([x8, x, depth.astype(x8.dtype)], -1)
    x9 = conv2d(se_layer(x8, p['se_refin']), p['conv_refin']['w'],
                bias=p['conv_refin']['b'], padding=1, act='relu')
    H, W = x9.shape[1], x9.shape[2]
    pools = [avg_pool2d(x9, 32), avg_pool2d(x9, 16), avg_pool2d(x9, 8), avg_pool2d(x9, 4)]

    def head(z, cp):
        # O=1 conv: stays on XLA path (lane-1 Pallas output would be pure padding waste)
        z = conv2d(z, cp['w'], bias=cp['b'], act='relu')
        return upsample_bilinear(z, (H, W))

    heads = [head(pools[0], p['conv1010']), head(pools[1], p['conv1020']),
             head(pools[2], p['conv1030']), head(pools[3], p['conv1040'])]
    dehaze = jnp.concatenate(heads + [x9.astype(jnp.float32)], -1)
    return conv2d(dehaze, p['refine3']['w'], bias=p['refine3']['b'], padding=1, act=final_act)


# ---- full Model ---------------------------------------------------------------- #
def make_model(seed=0):
    pg = ParamGen(seed)
    return dict(
        multi_scale=make_multi_scale(pg, 8, 16),
        conv0=pg.conv(64, 8, 7), norm0=pg.bn(64),
        light=make_light(pg),
        block1=make_dense_block(pg, 64, 6), trans1=make_densenet_transition(pg, 256),
        block2=make_dense_block(pg, 128, 12), trans2=make_densenet_transition(pg, 512),
        block3=make_dense_block(pg, 256, 24), trans3=make_densenet_transition(pg, 1024),
        Jdb4=make_bottleneck(pg, 512, 256), Jt4=make_transition(pg, 768, 128),
        Jr41=make_residual(pg, 128), Jr42=make_residual(pg, 128),
        ATdb4=make_bottleneck(pg, 512, 256), ATt4=make_transition(pg, 768, 128),
        ATr41=make_residual(pg, 128), ATr42=make_residual(pg, 128),
        Wdb4=make_bottleneck(pg, 512, 256), Wt4=make_transition(pg, 768, 128),
        Wr41=make_residual(pg, 128), Wr42=make_residual(pg, 128),
        decoder_A=make_decoder(pg), decoder_T=make_decoder(pg),
        decoder_J=make_decoder(pg), decoder_w=make_decoder(pg),
        convw1=dict(w=pg.conv(32, 3, 3), b=pg.bias(32)),
        Resw=make_residual(pg, 32),
        convw=dict(w=pg.conv(1, 32, 3), b=pg.bias(1)))
    # convT1 / ResT / convT / sigA / JGen are defined in the torch module but unused in forward.


@jax.jit
def model_forward(p, x, depth1, g, depth2):
    # x, depth1, g, depth2: NHWC.  One jit over the whole forward pass.
    x_cat = jnp.concatenate([x, depth1, g, depth2], -1)                      # 8 ch
    x_ms = multi_scale_fwd(x_cat, p['multi_scale'])                          # 8 ch @ HxW
    # conv0 + norm0 + relu fused (BN folded into the matmul epilogue)
    x0 = conv2d(x_ms, p['conv0'], stride=2, padding=3,
                scale=p['norm0'][0], bias=p['norm0'][1], act='relu')         # 64 @ H/2
    x0 = max_pool_3x3_s2_p1(x0)                                              # 64 @ H/4
    x1 = densenet_transition(dense_block(x0, p['block1']), p['trans1'])      # 128 @ H/8
    x2 = densenet_transition(dense_block(x1, p['block2']), p['trans2'])      # 256 @ H/16
    g_light = light_estimation_relu2_2(g, p['light'])                        # 256 @ H/16
    x3 = densenet_transition(dense_block(x2, p['block3']), p['trans3'])      # 512 @ H/32

    # TODO(synk): Jdb4/ATdb4/Wdb4 share x3 (and decoder_A/decoder_T share all inputs);
    # their first-layer matmuls could be batched along N to fill the 256x256 MXU and
    # reuse one im2col DMA (v6e/v7x win) -- kept separate here for clarity/safety.
    def branch(db, t, r1, r2):
        y = transition_block(bottleneck_decoder_block(x3, p[db]), p[t])
        return residual_block(residual_block(y, p[r1]), p[r2])

    x4J = branch('Jdb4', 'Jt4', 'Jr41', 'Jr42')
    x4AT = branch('ATdb4', 'ATt4', 'ATr41', 'ATr42')
    x4W = branch('Wdb4', 'Wt4', 'Wr41', 'Wr42')

    A = se_dense_decoder(p['decoder_A'], x, x1, x2, g_light, x4AT, depth1)
    T = se_dense_decoder(p['decoder_T'], x, x1, x2, g_light, x4AT, depth1, final_act='sigmoid')
    J_AT = A * T
    J_direct = se_dense_decoder(p['decoder_J'], x, x1, x2, g_light, x4J, depth1)

    w = se_dense_decoder(p['decoder_w'], x, x1, x2, g_light, x4W, depth1)
    w = conv2d(w, p['convw1']['w'], bias=p['convw1']['b'], padding=1)
    w = residual_block(w, p['Resw'])
    w = conv2d(w, p['convw']['w'], bias=p['convw']['b'], padding=1, act='sigmoid')
    w = jnp.tile(w, (1, 1, 1, 3))
    J_total = w * J_direct + (1.0 - w) * J_AT
    outs = (J_total, J_direct, J_AT, A, T, w, g_light)
    return tuple(o.astype(jnp.float32) for o in outs)


# --------------------------------------------------------------------------- #
if __name__ == "__main__":
    H = W = 32   # smallest size compatible with the /32 encoder stride and avg_pool2d(x9, 32)
    key = jax.random.PRNGKey(0)
    kx, kd1, kg, kd2 = jax.random.split(key, 4)
    x_nchw = jax.random.normal(kx, (1, 3, H, W), jnp.float32)
    d1_nchw = jax.random.normal(kd1, (1, 1, H, W), jnp.float32)
    g_nchw = jax.random.normal(kg, (1, 3, H, W), jnp.float32)
    d2_nchw = jax.random.normal(kd2, (1, 1, H, W), jnp.float32)

    params = make_model(seed=0)

    nhwc = lambda a: jnp.transpose(a, (0, 2, 3, 1))
    nchw = lambda a: jnp.transpose(a, (0, 3, 1, 2))

    outs = model_forward(params, nhwc(x_nchw), nhwc(d1_nchw), nhwc(g_nchw), nhwc(d2_nchw))
    J_total, J_direct, J_AT, A, T, w, g_light = [nchw(o) for o in outs]
    jax.block_until_ready((J_total, J_direct, J_AT, A, T, w, g_light))

    assert J_total.shape == (1, 3, H, W)
    assert w.shape == (1, 3, H, W)
    assert g_light.shape == (1, 256, H // 16, W // 16)
    assert all(bool(jnp.all(jnp.isfinite(o))) for o in (J_total, J_direct, J_AT, A, T, w))
    print("KERNEL_OK")
</pallas_src>

<mosaic_0001>
module attributes {stable_mosaic.version = 11 : i64} {
  func.func @_mm_fused_multi_kernel(%arg0: i32, %arg1: i32, %arg2: i32, %arg3: memref<16x512xbf16, #tpu.memory_space<vmem>>, %arg4: memref<512x128xbf16, #tpu.memory_space<vmem>>, %arg5: memref<1x128xf32, #tpu.memory_space<vmem>>, %arg6: memref<1x128xf32, #tpu.memory_space<vmem>>, %arg7: memref<16x128xbf16, #tpu.memory_space<vmem>>, %arg8: memref<16x128xf32, #tpu.memory_space<vmem>>) attributes {dimension_semantics = [#tpu.dimension_semantics<parallel>, #tpu.dimension_semantics<parallel>, #tpu.dimension_semantics<arbitrary>], iteration_bounds = array<i64: 1, 1, 9>, scalar_prefetch = 0 : i64, scratch_operands = 1 : i64, tpu.core_type = #tpu.core_type<tc>, window_params = [{transform_indices = @transform_0, window_bounds = array<i64: 16, 512>}, {transform_indices = @transform_1, window_bounds = array<i64: 512, 128>}, {transform_indices = @transform_2, window_bounds = array<i64: 1, 128>}, {transform_indices = @transform_3, window_bounds = array<i64: 1, 128>}, {transform_indices = @transform_4, window_bounds = array<i64: 16, 128>}]} {
    %c0_i32 = arith.constant 0 : i32
    %0 = arith.cmpi eq, %arg2, %c0_i32 : i32
    %1 = arith.extui %0 : i1 to i32
    %c0_i32_0 = arith.constant 0 : i32
    %2 = arith.cmpi ne, %1, %c0_i32_0 : i32
    scf.if %2 {
      %cst_9 = arith.constant 0.000000e+00 : f32
      %12 = vector.broadcast %cst_9 : f32 to vector<16x128xf32>
      %c0_10 = arith.constant 0 : index
      %c0_11 = arith.constant 0 : index
      %13 = vector.load %arg8[%c0_10, %c0_11] : memref<16x128xf32, #tpu.memory_space<vmem>>, vector<16x128xf32>
      tpu.vector_store %arg8[%c0_10, %c0_11], %12 {strides = array<i32>} : memref<16x128xf32, #tpu.memory_space<vmem>>, vector<16x128xf32>,
    } else {
    }
    %c0 = arith.constant 0 : index
    %c0_1 = arith.constant 0 : index
    %3 = vector.load %arg8[%c0, %c0_1] : memref<16x128xf32, #tpu.memory_space<vmem>>, vector<16x128xf32>
    %c0_2 = arith.constant 0 : index
    %c0_3 = arith.constant 0 : index
    %4 = vector.load %arg3[%c0_2, %c0_3] : memref<16x512xbf16, #tpu.memory_space<vmem>>, vector<16x512xbf16>
    %c0_4 = arith.constant 0 : index
    %c0_5 = arith.constant 0 : index
    %5 = vector.load %arg4[%c0_4, %c0_5] : memref<512x128xbf16, #tpu.memory_space<vmem>>, vector<512x128xbf16>
    %cst = arith.constant dense<0.000000e+00> : vector<16x128xf32>
    %6 = tpu.matmul %4, %5, %cst {dimension_numbers = #tpu.dot_dimension_numbers<[1], [0], [0], [1], [0, 0, 1, 1], [], []>} : vector<16x512xbf16>, vector<512x128xbf16>, vector<16x128xf32> -> vector<16x128xf32>
    %7 = arith.addf %3, %6 : vector<16x128xf32>
    %c0_6 = arith.constant 0 : index
    %c0_7 = arith.constant 0 : index
    %8 = vector.load %arg8[%c0_6, %c0_7] : memref<16x128xf32, #tpu.memory_space<vmem>>, vector<16x128xf32>
    tpu.vector_store %arg8[%c0_6, %c0_7], %7 {strides = array<i32>} : memref<16x128xf32, #tpu.memory_space<vmem>>, vector<16x128xf32>,
    %c8_i32 = arith.constant 8 : i32
    %9 = arith.cmpi eq, %arg2, %c8_i32 : i32
    %10 = arith.extui %9 : i1 to i32
    %c0_i32_8 = arith.constant 0 : i32
    %11 = arith.cmpi ne, %10, %c0_i32_8 : i32
    scf.if %11 {
      %c0_9 = arith.constant 0 : index
      %c0_10 = arith.constant 0 : index
      %12 = vector.load %arg8[%c0_9, %c0_10] : memref<16x128xf32, #tpu.memory_space<vmem>>, vector<16x128xf32>
      %c0_11 = arith.constant 0 : index
      %c0_12 = arith.constant 0 : index
      %13 = vector.load %arg5[%c0_11, %c0_12] : memref<1x128xf32, #tpu.memory_space<vmem>>, vector<1x128xf32>
      %14 = vector.broadcast %13 : vector<1x128xf32> to vector<16x128xf32>
      %15 = arith.mulf %12, %14 : vector<16x128xf32>
      %c0_13 = arith.constant 0 : index
      %c0_14 = arith.constant 0 : index
      %16 = vector.load %arg6[%c0_13, %c0_14] : memref<1x128xf32, #tpu.memory_space<vmem>>, vector<1x128xf32>
      %17 = vector.broadcast %16 : vector<1x128xf32> to vector<16x128xf32>
      %18 = arith.addf %15, %17 : vector<16x128xf32>
      %cst_15 = arith.constant 0.000000e+00 : f32
      %19 = vector.broadcast %cst_15 : f32 to vector<16x128xf32>
      %20 = arith.cmpf oge, %18, %19 : vector<16x128xf32>
      %cst_16 = arith.constant 2.000000e-01 : f32
      %21 = vector.broadcast %cst_16 : f32 to vector<16x128xf32>
      %22 = arith.mulf %21, %18 : vector<16x128xf32>
      %23 = arith.select %20, %18, %22 : vector<16x128xi1>, vector<16x128xf32>
      %24 = arith.truncf %23 : vector<16x128xf32> to vector<16x128xbf16>
      %c0_17 = arith.constant 0 : index
      %c0_18 = arith.constant 0 : index
      %25 = vector.load %arg7[%c0_17, %c0_18] : memref<16x128xbf16, #tpu.memory_space<vmem>>, vector<16x128xbf16>
      tpu.vector_store %arg7[%c0_17, %c0_18], %24 {strides = array<i32>} : memref<16x128xbf16, #tpu.memory_space<vmem>>, vector<16x128xbf16>,
    } else {
    }
    return
  }
  func.func @transform_0(%arg0: i32, %arg1: i32, %arg2: i32) -> (i32, i32) {
    %c0_i32 = arith.constant 0 : i32
    return %arg0, %arg2 : i32, i32
  }
  func.func @transform_1(%arg0: i32, %arg1: i32, %arg2: i32) -> (i32, i32) {
    %c0_i32 = arith.constant 0 : i32
    return %arg2, %arg1 : i32, i32
  }
  func.func @transform_2(%arg0: i32, %arg1: i32, %arg2: i32) -> (i32, i32) {
    %c0_i32 = arith.constant 0 : i32
    %c0_i32_0 = arith.constant 0 : i32
    return %c0_i32, %arg1 : i32, i32
  }
  func.func @transform_3(%arg0: i32, %arg1: i32, %arg2: i32) -> (i32, i32) {
    %c0_i32 = arith.constant 0 : i32
    %c0_i32_0 = arith.constant 0 : i32
    return %c0_i32, %arg1 : i32, i32
  }
  func.func @transform_4(%arg0: i32, %arg1: i32, %arg2: i32) -> (i32, i32) {
    %c0_i32 = arith.constant 0 : i32
    return %arg0, %arg1 : i32, i32
  }
}

</mosaic_0001>

<llo_original>
// kernel: _conv_pallas.1
$region0: #{_conv_pallas.1}
  #allocation0 [shape = 'u32[]', space=smem, size = 0x4, offset = 0x4, fixed_abs, tag = 'smem constant byte address 0x4 - core index']
  #allocation1 [shape = 'u32[144,128]{1,0:T(1,128)}', space=vmem, size = 0x12000, scoped, tag = 'internal scratch']
  #allocation2 [shape = 'f32[16,128]{1,0:T(8,128)}', space=vmem, size = 0x2000, scoped, tag = 'scratch operand']
  %s0 = inlined_call_operand.hbm [shape: bf16[16,4608], index: 0, kind: input, shape index: {}]
  %s1 = inlined_call_operand.hbm [shape: bf16[4608,128], index: 1, kind: input, shape index: {}]
  %s2 = inlined_call_operand.hbm [shape: f32[1,128], index: 2, kind: input, shape index: {}]
  %s3 = inlined_call_operand.hbm [shape: f32[1,128], index: 3, kind: input, shape index: {}]
  %s4 = inlined_call_operand.hbm [shape: bf16[16,128], index: 4, kind: output, shape index: {}]
  %s5 = sld [smem:[#allocation0]]
  $region73: #{_conv_pallas.1} parent=0
    _
  %s7 = ssub.s32 1, %s5
  %s8 = scalar_select 0, %s7, %s5
  $region1: #{_conv_pallas.1} parent=0
    #allocation3 [shape = 'u8[32768]{0}', space=vmem, size = 0x8000, scoped, tag = 'input window, operand 0']
    #allocation4 [shape = 's32[2]{0}', space=sflag, size = 0x8, scoped, tag = 'scoped memory for _conv_pallas.1']
    #allocation5 [shape = 's32[2]{0}', space=sflag, size = 0x8, scoped, tag = 'scoped memory for _conv_pallas.1']
    #allocation6 [shape = 'u8[262144]{0}', space=vmem, size = 0x40000, scoped, tag = 'input window, operand 1']
    #allocation7 [shape = 's32[2]{0}', space=sflag, size = 0x8, scoped, tag = 'scoped memory for _conv_pallas.1']
    #allocation8 [shape = 'u8[512]{0}', space=vmem, size = 0x400, scoped, tag = 'input window, operand 2, single buffered']
    #allocation9 [shape = 'u8[512]{0}', space=vmem, size = 0x400, scoped, tag = 'input window, operand 3, single buffered']
    #allocation10 [shape = 's32[1]{0}', space=sflag, size = 0x4, scoped, tag = 'scoped memory for _conv_pallas.1']
    #allocation11 [shape = 'u8[4096]{0}', space=vmem, size = 0x1000, scoped, tag = 'output window, operand 0, single buffered']
    %9 = vsyncpa [#allocation4], 0
    %s10 = scalar_lea.sflag [#allocation4], 1
    %11 = vsyncpa %s10, 0
    %12 = vsyncpa [#allocation7], 0
    %s13 = scalar_lea.sflag [#allocation7], 1
    %14 = vsyncpa %s13, 0
    %15 = vsyncpa [#allocation10], 0
    %16 = vsyncpa [#allocation5], 0
    loop: start=0, step=1, limit=11
    $region2: #{_conv_pallas.1} parent=1 // loop_pre_header
      _
    $region3: #{_conv_pallas.1} parent=1 // loop_header
      %s18 = sphi 0, %s22
      %p19 = scmp.ge.s32.totalorder %s18, 11
      %s25 = sphi 0, %s44
      %s26 = sphi 0, %s40
      %s27 = sphi 0, %s36
      %s28 = sphi 0, %s25
      %s29 = sphi 0, %s26
      %s30 = sphi 0, %s27
      %s31 = sphi 0, %s28
      %s32 = sphi 0, %s29
      %s33 = sphi 0, %s30
      %s49 = sphi 0, %s51
      %s52 = sphi 0, %s49
      %s53 = sphi 0, %s52
      %s69 = sphi 0, %s53
      %s77 = sphi 0, %s79
      %s80 = sphi 0, %s77
      %s81 = sphi 0, %s80
      %s97 = sphi 0, %s81
      %s103 = sphi 0, %s105
      %s106 = sphi 0, %s103
      %s107 = sphi 0, %s106
      %s123 = sphi 0, %s107
      %s129 = sphi 0, %s131
      %s132 = sphi 0, %s129
      %s133 = sphi 0, %s132
      %s149 = sphi 0, %s133
      %s157 = sphi 0, %s159
      %s160 = sphi 0, %s157
      %s161 = sphi 0, %s160
      %s177 = sphi 0, %s161
    $region4: #{_conv_pallas.1} parent=1 // loop_header_branch
      %21 = sbr.rel (%p19) target = $region8
    $region5: #{_conv_pallas.1} parent=1 // loop_body
      %s23 = ssub.s32 %s18, 1
      %s24 = ssub.s32 %s18, 2
      %s34 = sadd.s32 1, %s27
      %p35 = scmp.ge.s32.totalorder %s34, 9
      %s36 = scalar_select %p35, 0, %s34
      %s37 = sadd.s32 1, %s26
      %s38 = scalar_select %p35, %s37, %s26
      %p39 = scmp.ge.s32.totalorder %s38, 1
      %s40 = scalar_select %p39, 0, %s38
      %s41 = sadd.s32 1, %s25
      %s42 = scalar_select %p39, %s41, %s25
      %p43 = scmp.ge.s32.totalorder %s42, 1
      %s44 = scalar_select %p43, 0, %s42
      %s45 = ssub.s32 %s25, %s44
      %s46 = ssub.s32 %s27, %s36
      %s47 = sor.u32 %s45, %s46
      %p48 = scmp.eq.s32.totalorder %s47, 0
      %s50 = sadd.s32 %s49, 1
      %s51 = scalar_select %p48, %s49, %s50
      %p54 = pneg %p48
      %p55 = scmp.eq.s32.totalorder %s18, 8
      %p56 = por %p54, %p55
      %p57 = scmp.ne.s32.totalorder %s49, %s52
      %p58 = scmp.eq.s32.totalorder %s18, 0
      %p59 = por %p57, %p58
      %p60 = scmp.ne.s32.totalorder %s49, %s52
      %p61 = scmp.eq.s32.totalorder %s23, 8
      %p62 = por %p60, %p61
      %p63 = scmp.ne.s32.totalorder %s52, %s53
      %p64 = scmp.eq.s32.totalorder %s23, 0
      %p65 = por %p63, %p64
      %p66 = scmp.ne.s32.totalorder %s52, %s53
      %p67 = scmp.eq.s32.totalorder %s24, 8
      %p68 = por %p66, %p67
      %p70 = scmp.ne.s32.totalorder %s53, %s69
      %p71 = scmp.eq.s32.totalorder %s24, 0
      %p72 = por %p70, %p71
      %s73 = ssub.s32 %s27, %s36
      %s74 = ssub.s32 %s26, %s40
      %s75 = sor.u32 %s73, %s74
      %p76 = scmp.eq.s32.totalorder %s75, 0
      %s78 = sadd.s32 %s77, 1
      %s79 = scalar_select %p76, %s77, %s78
      %p82 = pneg %p76
      %p83 = scmp.eq.s32.totalorder %s18, 8
      %p84 = por %p82, %p83
      %p85 = scmp.ne.s32.totalorder %s77, %s80
      %p86 = scmp.eq.s32.totalorder %s18, 0
      %p87 = por %p85, %p86
      %p88 = scmp.ne.s32.totalorder %s77, %s80
      %p89 = scmp.eq.s32.totalorder %s23, 8
      %p90 = por %p88, %p89
      %p91 = scmp.ne.s32.totalorder %s80, %s81
      %p92 = scmp.eq.s32.totalorder %s23, 0
      %p93 = por %p91, %p92
      %p94 = scmp.ne.s32.totalorder %s80, %s81
      %p95 = scmp.eq.s32.totalorder %s24, 8
      %p96 = por %p94, %p95
      %p98 = scmp.ne.s32.totalorder %s81, %s97
      %p99 = scmp.eq.s32.totalorder %s24, 0
      %p100 = por %p98, %p99
      %s101 = ssub.s32 %s26, %s40
      %p102 = scmp.eq.s32.totalorder %s101, 0
      %s104 = sadd.s32 %s103, 1
      %s105 = scalar_select %p102, %s103, %s104
      %p108 = pneg %p102
      %p109 = scmp.eq.s32.totalorder %s18, 8
      %p110 = por %p108, %p109
      %p111 = scmp.ne.s32.totalorder %s103, %s106
      %p112 = scmp.eq.s32.totalorder %s18, 0
      %p113 = por %p111, %p112
      %p114 = scmp.ne.s32.totalorder %s103, %s106
      %p115 = scmp.eq.s32.totalorder %s23, 8
      %p116 = por %p114, %p115
      %p117 = scmp.ne.s32.totalorder %s106, %s107
      %p118 = scmp.eq.s32.totalorder %s23, 0
      %p119 = por %p117, %p118
      %p120 = scmp.ne.s32.totalorder %s106, %s107
      %p121 = scmp.eq.s32.totalorder %s24, 8
      %p122 = por %p120, %p121
      %p124 = scmp.ne.s32.totalorder %s107, %s123
      %p125 = scmp.eq.s32.totalorder %s24, 0
      %p126 = por %p124, %p125
      %s127 = ssub.s32 %s26, %s40
      %p128 = scmp.eq.s32.totalorder %s127, 0
      %s130 = sadd.s32 %s129, 1
      %s131 = scalar_select %p128, %s129, %s130
      %p134 = pneg %p128
      %p135 = scmp.eq.s32.totalorder %s18, 8
      %p136 = por %p134, %p135
      %p137 = scmp.ne.s32.totalorder %s129, %s132
      %p138 = scmp.eq.s32.totalorder %s18, 0
      %p139 = por %p137, %p138
      %p140 = scmp.ne.s32.totalorder %s129, %s132
      %p141 = scmp.eq.s32.totalorder %s23, 8
      %p142 = por %p140, %p141
      %p143 = scmp.ne.s32.totalorder %s132, %s133
      %p144 = scmp.eq.s32.totalorder %s23, 0
      %p145 = por %p143, %p144
      %p146 = scmp.ne.s32.totalorder %s132, %s133
      %p147 = scmp.eq.s32.totalorder %s24, 8
      %p148 = por %p146, %p147
      %p150 = scmp.ne.s32.totalorder %s133, %s149
      %p151 = scmp.eq.s32.totalorder %s24, 0
      %p152 = por %p150, %p151
      %s153 = ssub.s32 %s25, %s44
      %s154 = ssub.s32 %s26, %s40
      %s155 = sor.u32 %s153, %s154
      %p156 = scmp.eq.s32.totalorder %s155, 0
      %s158 = sadd.s32 %s157, 1
      %s159 = scalar_select %p156, %s157, %s158
      %p162 = pneg %p156
      %p163 = scmp.eq.s32.totalorder %s18, 8
      %p164 = por %p162, %p163
      %p165 = scmp.ne.s32.totalorder %s157, %s160
      %p166 = scmp.eq.s32.totalorder %s18, 0
      %p167 = por %p165, %p166
      %p168 = scmp.ne.s32.totalorder %s157, %s160
      %p169 = scmp.eq.s32.totalorder %s23, 8
      %p170 = por %p168, %p169
      %p171 = scmp.ne.s32.totalorder %s160, %s161
      %p172 = scmp.eq.s32.totalorder %s23, 0
      %p173 = por %p171, %p172
      %p174 = scmp.ne.s32.totalorder %s160, %s161
      %p175 = scmp.eq.s32.totalorder %s24, 8
      %p176 = por %p174, %p175
      %p178 = scmp.ne.s32.totalorder %s161, %s177
      %p179 = scmp.eq.s32.totalorder %s24, 0
      %p180 = por %p178, %p179
      %p181 = scmp.le.s32.totalorder 1, %s18
      %p182 = scmp.lt.s32.totalorder %s18, 10
      %p183 = pnand %p181, %p182
      %p184 = pneg %p183
      // Predicated region
      $region9: #{_conv_pallas.1} parent=5 // pred_check
        _
      $region10: #{_conv_pallas.1} parent=5 // pred_check_branch
        %186 = sbr.rel (%p183) target = $region12
      $region11: #{_conv_pallas.1} parent=5 // pred_region
        %s187 = ssub.s32 %s18, 1
        // Predicated region
        $region13: #{_conv_pallas.1} parent=11 // pred_check
          %p188 = pneg %p119
        $region14: #{_conv_pallas.1} parent=11 // pred_check_branch
          %190 = sbr.rel (%p188) target = $region16
        $region15: #{_conv_pallas.1} parent=11 // pred_region
          %s192 = ssub.s32 16, 16
          %193 = vsyncadd [#allocation7], %s192
          %s194 = smul.addr %s29, 16
          %s195 = scalar_lea.hbm %s2, %s194
          %s197 = sshll.u32 [#allocation8], 4
          %s198 = int_to_ptr.vmem [resolvable:$true] %s197
          %200 = dma.hbm_to_vmem [thread:$0]  %s195, 16, %s198, [#allocation7]
        $region16: #{_conv_pallas.1} parent=11 // pred_fallthru
          _
        // Predicated region
        $region17: #{_conv_pallas.1} parent=11 // pred_check
          %p201 = pneg %p145
        $region18: #{_conv_pallas.1} parent=11 // pred_check_branch
          %203 = sbr.rel (%p201) target = $region20
        $region19: #{_conv_pallas.1} parent=11 // pred_region
          %s205 = ssub.s32 16, 16
          %206 = vsyncadd [#allocation10], %s205
          %s207 = smul.addr %s29, 16
          %s208 = scalar_lea.hbm %s3, %s207
          %s210 = sshll.u32 [#allocation9], 4
          %s211 = int_to_ptr.vmem [resolvable:$true] %s210
          %213 = dma.hbm_to_vmem [thread:$0]  %s208, 16, %s211, [#allocation10]
        $region20: #{_conv_pallas.1} parent=11 // pred_fallthru
          _
      $region12: #{_conv_pallas.1} parent=5 // pred_fallthru
        _
      %p214 = scmp.lt.s32.totalorder %s18, 9
      // Predicated region
      $region21: #{_conv_pallas.1} parent=5 // pred_check
        %p215 = pneg %p214
      $region22: #{_conv_pallas.1} parent=5 // pred_check_branch
        %217 = sbr.rel (%p215) target = $region24
      $region23: #{_conv_pallas.1} parent=5 // pred_region
        // Predicated region
        $region25: #{_conv_pallas.1} parent=23 // pred_check
          %p218 = pneg %p59
        $region26: #{_conv_pallas.1} parent=23 // pred_check_branch
          %220 = sbr.rel (%p218) target = $region28
        $region27: #{_conv_pallas.1} parent=23 // pred_region
          %s221 = sand.u32 %s49, 1
          %s222 = scalar_lea.sflag [#allocation4], %s221
          %s223 = sand.u32 %s49, 1
          %s224 = smul.addr %s223, 32
          %s225 = scalar_lea.vmem [#allocation3], %s224
          %s226 = smul.u32 2, %s25
          %s227 = smul.u32 4, %s27
          %s229 = ssub.s32 512, 512
          %230 = vsyncadd %s222, %s229
          %s231 = smul.addr %s226, 36
          %s232 = sadd.s32 %s227, %s231
          %s233 = smul.addr %s232, 64
          %s234 = scalar_lea.hbm %s0, %s233
          %s235 = sshll.u32 %s225, 4
          %s236 = int_to_ptr.vmem [resolvable:$true] %s235
          %241 = dma.hbm_to_vmem [thread:$0]  %s234, 512, %s236, %s222, 2304, 256, 16
        $region28: #{_conv_pallas.1} parent=23 // pred_fallthru
          _
        // Predicated region
        $region29: #{_conv_pallas.1} parent=23 // pred_check
          %p242 = pneg %p87
        $region30: #{_conv_pallas.1} parent=23 // pred_check_branch
          %244 = sbr.rel (%p242) target = $region32
        $region31: #{_conv_pallas.1} parent=23 // pred_region
          %s245 = sand.u32 %s18, 1
          %s246 = scalar_lea.sflag [#allocation7], %s245
          %s247 = sand.u32 %s77, 1
          %s248 = smul.addr %s247, 256
          %s249 = scalar_lea.vmem [#allocation6], %s248
          %s250 = smul.u32 64, %s27
          %s252 = ssub.s32 4096, 4096
          %253 = vsyncadd %s246, %s252
          %s254 = sadd.s32 %s26, %s250
          %s255 = smul.addr %s254, 64
          %s256 = scalar_lea.hbm %s1, %s255
          %s257 = sshll.u32 %s249, 4
          %s258 = int_to_ptr.vmem [resolvable:$true] %s257
          %263 = dma.hbm_to_vmem [thread:$0]  %s256, 4096, %s258, %s246, 64, 64, 4
        $region32: #{_conv_pallas.1} parent=23 // pred_fallthru
          _
      $region24: #{_conv_pallas.1} parent=5 // pred_fallthru
        _
      %p264 = scmp.le.s32.totalorder 1, %s18
      %p265 = scmp.lt.s32.totalorder %s18, 10
      %p266 = pnand %p264, %p265
      %p267 = pneg %p266
      // Predicated region
      $region33: #{_conv_pallas.1} parent=5 // pred_check
        _
      $region34: #{_conv_pallas.1} parent=5 // pred_check_branch
        %269 = sbr.rel (%p266) target = $region36
      $region35: #{_conv_pallas.1} parent=5 // pred_region
        %s270 = ssub.s32 %s18, 1
        %s271 = sand.u32 %s52, 1
        %s272 = scalar_lea.sflag [#allocation4], %s271
        %s273 = sand.u32 %s52, 1
        %s274 = smul.addr %s273, 32
        %s275 = scalar_lea.vmem [#allocation3], %s274
        // Predicated region
        $region37: #{_conv_pallas.1} parent=35 // pred_check
          %p276 = pneg %p65
        $region38: #{_conv_pallas.1} parent=35 // pred_check_branch
          %278 = sbr.rel (%p276) target = $region40
        $region39: #{_conv_pallas.1} parent=35 // pred_region
          %279 = dma.done %s272, 512
        $region40: #{_conv_pallas.1} parent=35 // pred_fallthru
          _
        %s280 = sand.u32 %s23, 1
        %s281 = scalar_lea.sflag [#allocation7], %s280
        %s282 = sand.u32 %s80, 1
        %s283 = smul.addr %s282, 256
        %s284 = scalar_lea.vmem [#allocation6], %s283
        // Predicated region
        $region41: #{_conv_pallas.1} parent=35 // pred_check
          %p285 = pneg %p93
        $region42: #{_conv_pallas.1} parent=35 // pred_check_branch
          %287 = sbr.rel (%p285) target = $region44
        $region43: #{_conv_pallas.1} parent=35 // pred_region
          %288 = dma.done %s281, 4096
        $region44: #{_conv_pallas.1} parent=35 // pred_fallthru
          _
        // Predicated region
        $region45: #{_conv_pallas.1} parent=35 // pred_check
          %p289 = pneg %p119
        $region46: #{_conv_pallas.1} parent=35 // pred_check_branch
          %291 = sbr.rel (%p289) target = $region48
        $region47: #{_conv_pallas.1} parent=35 // pred_region
          %292 = dma.done [#allocation7], 16
        $region48: #{_conv_pallas.1} parent=35 // pred_fallthru
          _
        // Predicated region
        $region49: #{_conv_pallas.1} parent=35 // pred_check
          %p293 = pneg %p145
        $region50: #{_conv_pallas.1} parent=35 // pred_check_branch
          %295 = sbr.rel (%p293) target = $region52
        $region51: #{_conv_pallas.1} parent=35 // pred_region
          %296 = dma.done [#allocation10], 16
        $region52: #{_conv_pallas.1} parent=35 // pred_fallthru
          _
        %s297 = sand.u32 %s52, 1
        %s298 = scalar_lea.sflag [#allocation4], %s297
        %s299 = sand.u32 %s52, 1
        %s300 = smul.addr %s299, 32
        %s301 = scalar_lea.vmem [#allocation3], %s300
        %p302 = pneg %p65
        %p303 = pneg %p62
        %s304 = sand.u32 %s23, 1
        %s305 = scalar_lea.sflag [#allocation7], %s304
        %s306 = sand.u32 %s80, 1
        %s307 = smul.addr %s306, 256
        %s308 = scalar_lea.vmem [#allocation6], %s307
        %p309 = pneg %p93
        %p310 = pneg %p90
        %p311 = pneg %p119
        %p312 = pneg %p116
        %p313 = pneg %p145
        %p314 = pneg %p142
        %p315 = pneg %p173
        %p316 = pneg %p170
        %s317 = smul.u32 2, %s28
        %s318 = smul.u32 4, %s30
        %s319 = smul.u32 64, %s30
        %s320 = smul.u32 2, %s28
        %p322 = scmp.eq.s32.totalorder %s30, 0
        // Predicated region
        $region53: #{_conv_pallas.1} parent=35 // pred_check
          %p323 = pneg %p322
        $region54: #{_conv_pallas.1} parent=35 // pred_check_branch
          %325 = sbr.rel (%p323) target = $region56
        $region55: #{_conv_pallas.1} parent=35 // pred_region
          %326 = vst [vmem:[#allocation2] sm:$0xff] 0.0
          %327 = vst [vmem:[#allocation2 + $0x8] sm:$0xff] 0.0
        $region56: #{_conv_pallas.1} parent=35 // pred_fallthru
          _
        %v328 = vld [vmem:[#allocation2] sm:$0xff]
        %v329 = vld [vmem:[#allocation2 + $0x8] sm:$0xff]
        %v330 = vld [vmem:[%s275] sm:$0xff]
        %v331 = vld [vmem:[%s275 + $0x8] sm:$0xff]
        %v332 = vld [vmem:[%s275 + $0x10] sm:$0xff]
        %v333 = vld [vmem:[%s275 + $0x18] sm:$0xff]
        %v334 = vld [vmem:[%s284] sm:$0xf]
        %v335 = vld [vmem:[%s284 + $0x4] sm:$0xf]
        %v336 = vld [vmem:[%s284 + $0x8] sm:$0xf]
        %v337 = vld [vmem:[%s284 + $0xc] sm:$0xf]
        %v338 = vld [vmem:[%s284 + $0x10] sm:$0xf]
        %v339 = vld [vmem:[%s284 + $0x14] sm:$0xf]
        %v340 = vld [vmem:[%s284 + $0x18] sm:$0xf]
        %v341 = vld [vmem:[%s284 + $0x1c] sm:$0xf]
        %v342 = vld [vmem:[%s284 + $0x20] sm:$0xf]
        %v343 = vld [vmem:[%s284 + $0x24] sm:$0xf]
        %v344 = vld [vmem:[%s284 + $0x28] sm:$0xf]
        %v345 = vld [vmem:[%s284 + $0x2c] sm:$0xf]
        %v346 = vld [vmem:[%s284 + $0x30] sm:$0xf]
        %v347 = vld [vmem:[%s284 + $0x34] sm:$0xf]
        %v348 = vld [vmem:[%s284 + $0x38] sm:$0xf]
        %v349 = vld [vmem:[%s284 + $0x3c] sm:$0xf]
        %v350 = vld [vmem:[%s284 + $0x40] sm:$0xf]
        %v351 = vld [vmem:[%s284 + $0x44] sm:$0xf]
        %v352 = vld [vmem:[%s284 + $0x48] sm:$0xf]
        %v353 = vld [vmem:[%s284 + $0x4c] sm:$0xf]
        %v354 = vld [vmem:[%s284 + $0x50] sm:$0xf]
        %v355 = vld [vmem:[%s284 + $0x54] sm:$0xf]
        %v356 = vld [vmem:[%s284 + $0x58] sm:$0xf]
        %v357 = vld [vmem:[%s284 + $0x5c] sm:$0xf]
        %v358 = vld [vmem:[%s284 + $0x60] sm:$0xf]
        %v359 = vld [vmem:[%s284 + $0x64] sm:$0xf]
        %v360 = vld [vmem:[%s284 + $0x68] sm:$0xf]
        %v361 = vld [vmem:[%s284 + $0x6c] sm:$0xf]
        %v362 = vld [vmem:[%s284 + $0x70] sm:$0xf]
        %v363 = vld [vmem:[%s284 + $0x74] sm:$0xf]
        %v364 = vld [vmem:[%s284 + $0x78] sm:$0xf]
        %v365 = vld [vmem:[%s284 + $0x7c] sm:$0xf]
        %v366 = vld [vmem:[%s284 + $0x80] sm:$0xf]
        %v367 = vld [vmem:[%s284 + $0x84] sm:$0xf]
        %v368 = vld [vmem:[%s284 + $0x88] sm:$0xf]
        %v369 = vld [vmem:[%s284 + $0x8c] sm:$0xf]
        %v370 = vld [vmem:[%s284 + $0x90] sm:$0xf]
        %v371 = vld [vmem:[%s284 + $0x94] sm:$0xf]
        %v372 = vld [vmem:[%s284 + $0x98] sm:$0xf]
        %v373 = vld [vmem:[%s284 + $0x9c] sm:$0xf]
        %v374 = vld [vmem:[%s284 + $0xa0] sm:$0xf]
        %v375 = vld [vmem:[%s284 + $0xa4] sm:$0xf]
        %v376 = vld [vmem:[%s284 + $0xa8] sm:$0xf]
        %v377 = vld [vmem:[%s284 + $0xac] sm:$0xf]
        %v378 = vld [vmem:[%s284 + $0xb0] sm:$0xf]
        %v379 = vld [vmem:[%s284 + $0xb4] sm:$0xf]
        %v380 = vld [vmem:[%s284 + $0xb8] sm:$0xf]
        %v381 = vld [vmem:[%s284 + $0xbc] sm:$0xf]
        %v382 = vld [vmem:[%s284 + $0xc0] sm:$0xf]
        %v383 = vld [vmem:[%s284 + $0xc4] sm:$0xf]
        %v384 = vld [vmem:[%s284 + $0xc8] sm:$0xf]
        %v385 = vld [vmem:[%s284 + $0xcc] sm:$0xf]
        %v386 = vld [vmem:[%s284 + $0xd0] sm:$0xf]
        %v387 = vld [vmem:[%s284 + $0xd4] sm:$0xf]
        %v388 = vld [vmem:[%s284 + $0xd8] sm:$0xf]
        %v389 = vld [vmem:[%s284 + $0xdc] sm:$0xf]
        %v390 = vld [vmem:[%s284 + $0xe0] sm:$0xf]
        %v391 = vld [vmem:[%s284 + $0xe4] sm:$0xf]
        %v392 = vld [vmem:[%s284 + $0xe8] sm:$0xf]
        %v393 = vld [vmem:[%s284 + $0xec] sm:$0xf]
        %v394 = vld [vmem:[%s284 + $0xf0] sm:$0xf]
        %v395 = vld [vmem:[%s284 + $0xf4] sm:$0xf]
        %v396 = vld [vmem:[%s284 + $0xf8] sm:$0xf]
        %v397 = vld [vmem:[%s284 + $0xfc] sm:$0xf]
        %v402 = vunpack.c.l.b16 %v330
        %v403 = vunpack.c.h.b16 %v330
        %v404 = vunpack.c.l.b16 %v331
        %v405 = vunpack.c.h.b16 %v331
        %v406 = vunpack.c.l.b16 %v332
        %v407 = vunpack.c.h.b16 %v332
        %v408 = vunpack.c.l.b16 %v333
        %v409 = vunpack.c.h.b16 %v333
        %v410 = vpack.c.b16 %v406, %v402
        %v411 = vpack.c.b16 %v407, %v403
        %v412 = vpack.c.b16 %v408, %v404
        %v413 = vpack.c.b16 %v409, %v405
        %v482 = vunpack.c.l.b16 %v334
        %v483 = vunpack.c.l.b16 %v335
        %v484 = vunpack.c.l.b16 %v336
        %v485 = vunpack.c.l.b16 %v337
        %v486 = vunpack.c.l.b16 %v338
        %v487 = vunpack.c.l.b16 %v339
        %v488 = vunpack.c.l.b16 %v340
        %v489 = vunpack.c.l.b16 %v341
        %v490 = vunpack.c.l.b16 %v342
        %v491 = vunpack.c.l.b16 %v343
        %v492 = vunpack.c.l.b16 %v344
        %v493 = vunpack.c.l.b16 %v345
        %v494 = vunpack.c.l.b16 %v346
        %v495 = vunpack.c.l.b16 %v347
        %v496 = vunpack.c.l.b16 %v348
        %v497 = vunpack.c.l.b16 %v349
        %v498 = vunpack.c.l.b16 %v350
        %v499 = vunpack.c.l.b16 %v351
        %v500 = vunpack.c.l.b16 %v352
        %v501 = vunpack.c.l.b16 %v353
        %v502 = vunpack.c.l.b16 %v354
        %v503 = vunpack.c.l.b16 %v355
        %v504 = vunpack.c.l.b16 %v356
        %v505 = vunpack.c.l.b16 %v357
        %v506 = vunpack.c.l.b16 %v358
        %v507 = vunpack.c.l.b16 %v359
        %v508 = vunpack.c.l.b16 %v360
        %v509 = vunpack.c.l.b16 %v361
        %v510 = vunpack.c.l.b16 %v362
        %v511 = vunpack.c.l.b16 %v363
        %v512 = vunpack.c.l.b16 %v364
        %v513 = vunpack.c.l.b16 %v365
        %v514 = vunpack.c.l.b16 %v366
        %v515 = vunpack.c.l.b16 %v367
        %v516 = vunpack.c.l.b16 %v368
        %v517 = vunpack.c.l.b16 %v369
        %v518 = vunpack.c.l.b16 %v370
        %v519 = vunpack.c.l.b16 %v371
        %v520 = vunpack.c.l.b16 %v372
        %v521 = vunpack.c.l.b16 %v373
        %v522 = vunpack.c.l.b16 %v374
        %v523 = vunpack.c.l.b16 %v375
        %v524 = vunpack.c.l.b16 %v376
        %v525 = vunpack.c.l.b16 %v377
        %v526 = vunpack.c.l.b16 %v378
        %v527 = vunpack.c.l.b16 %v379
        %v528 = vunpack.c.l.b16 %v380
        %v529 = vunpack.c.l.b16 %v381
        %v530 = vunpack.c.l.b16 %v382
        %v531 = vunpack.c.l.b16 %v383
        %v532 = vunpack.c.l.b16 %v384
        %v533 = vunpack.c.l.b16 %v385
        %v534 = vunpack.c.l.b16 %v386
        %v535 = vunpack.c.l.b16 %v387
        %v536 = vunpack.c.l.b16 %v388
        %v537 = vunpack.c.l.b16 %v389
        %v538 = vunpack.c.l.b16 %v390
        %v539 = vunpack.c.l.b16 %v391
        %v540 = vunpack.c.l.b16 %v392
        %v541 = vunpack.c.l.b16 %v393
        %v542 = vunpack.c.l.b16 %v394
        %v543 = vunpack.c.l.b16 %v395
        %v544 = vunpack.c.l.b16 %v396
        %v545 = vunpack.c.l.b16 %v397
        %v546 = vpack.c.b16 %v483, %v482
        %v547 = vpack.c.b16 %v485, %v484
        %v548 = vpack.c.b16 %v487, %v486
        %v549 = vpack.c.b16 %v489, %v488
        %v550 = vpack.c.b16 %v491, %v490
        %v551 = vpack.c.b16 %v493, %v492
        %v552 = vpack.c.b16 %v495, %v494
        %v553 = vpack.c.b16 %v497, %v496
        %v554 = vpack.c.b16 %v499, %v498
        %v555 = vpack.c.b16 %v501, %v500
        %v556 = vpack.c.b16 %v503, %v502
        %v557 = vpack.c.b16 %v505, %v504
        %v558 = vpack.c.b16 %v507, %v506
        %v559 = vpack.c.b16 %v509, %v508
        %v560 = vpack.c.b16 %v511, %v510
        %v561 = vpack.c.b16 %v513, %v512
        %v562 = vpack.c.b16 %v515, %v514
        %v563 = vpack.c.b16 %v517, %v516
        %v564 = vpack.c.b16 %v519, %v518
        %v565 = vpack.c.b16 %v521, %v520
        %v566 = vpack.c.b16 %v523, %v522
        %v567 = vpack.c.b16 %v525, %v524
        %v568 = vpack.c.b16 %v527, %v526
        %v569 = vpack.c.b16 %v529, %v528
        %v570 = vpack.c.b16 %v531, %v530
        %v571 = vpack.c.b16 %v533, %v532
        %v572 = vpack.c.b16 %v535, %v534
        %v573 = vpack.c.b16 %v537, %v536
        %v574 = vpack.c.b16 %v539, %v538
        %v575 = vpack.c.b16 %v541, %v540
        %v576 = vpack.c.b16 %v543, %v542
        %v577 = vpack.c.b16 %v545, %v544
        %610 = vmatprep.subr.bf16.mxu0 0
        %611 = vmatpush1.bf16.msra.mxu0 %v546
        %612 = vmatprep.subr.bf16.mxu0 0
        %613 = vmatpush1.bf16.msra.mxu0 %v547
        %614 = vmatprep.subr.bf16.mxu0 0
        %615 = vmatpush1.bf16.msra.mxu0 %v548
        %616 = vmatprep.subr.bf16.mxu0 0
        %617 = vmatpush1.bf16.msra.mxu0 %v549
        %618 = vmatprep.subr.bf16.mxu0 0
        %619 = vmatpush1.bf16.msra.mxu0 %v550
        %620 = vmatprep.subr.bf16.mxu0 0
        %621 = vmatpush1.bf16.msra.mxu0 %v551
        %622 = vmatprep.subr.bf16.mxu0 0
        %623 = vmatpush1.bf16.msra.mxu0 %v552
        %624 = vmatprep.subr.bf16.mxu0 0
        %625 = vmatpush1.bf16.msra.mxu0 %v553
        %626 = vmatprep.subr.bf16.mxu0 0
        %627 = vmatpush1.bf16.msra.mxu0 %v554
        %628 = vmatprep.subr.bf16.mxu0 0
        %629 = vmatpush1.bf16.msra.mxu0 %v555
        %630 = vmatprep.subr.bf16.mxu0 0
        %631 = vmatpush1.bf16.msra.mxu0 %v556
        %632 = vmatprep.subr.bf16.mxu0 0
        %633 = vmatpush1.bf16.msra.mxu0 %v557
        %634 = vmatprep.subr.bf16.mxu0 0
        %635 = vmatpush1.bf16.msra.mxu0 %v558
        %636 = vmatprep.subr.bf16.mxu0 0
        %637 = vmatpush1.bf16.msra.mxu0 %v559
        %638 = vmatprep.subr.bf16.mxu0 0
        %639 = vmatpush1.bf16.msra.mxu0 %v560
        %640 = vmatprep.subr.bf16.mxu0 0
        %641 = vmatpush1.bf16.msra.mxu0 %v561
        %642 = vmatprep.mubr.bf16.mxu0 %v411
        %643 = vmatmul.mubr.bf16.gmra.mrb[0].mxu0 %v410
        %v644 = vpop.f32.mrb[0].mxu0
        %v645 = vadd.f32 0.0, %v644
        %v646 = vpop.f32.mrb[0].mxu0
        %v647 = vpop.f32.mrb[0].mxu0
        %v648 = vadd.f32 0.0, %v647
        %v649 = vpop.f32.mrb[0].mxu0
        %650 = vdwg.mxu0
        %651 = vmatprep.subr.bf16.mxu0 0
        %652 = vmatpush1.bf16.msra.mxu0 %v562
        %653 = vmatprep.subr.bf16.mxu0 0
        %654 = vmatpush1.bf16.msra.mxu0 %v563
        %655 = vmatprep.subr.bf16.mxu0 0
        %656 = vmatpush1.bf16.msra.mxu0 %v564
        %657 = vmatprep.subr.bf16.mxu0 0
        %658 = vmatpush1.bf16.msra.mxu0 %v565
        %659 = vmatprep.subr.bf16.mxu0 0
        %660 = vmatpush1.bf16.msra.mxu0 %v566
        %661 = vmatprep.subr.bf16.mxu0 0
        %662 = vmatpush1.bf16.msra.mxu0 %v567
        %663 = vmatprep.subr.bf16.mxu0 0
        %664 = vmatpush1.bf16.msra.mxu0 %v568
        %665 = vmatprep.subr.bf16.mxu0 0
        %666 = vmatpush1.bf16.msra.mxu0 %v569
        %667 = vmatprep.subr.bf16.mxu0 0
        %668 = vmatpush1.bf16.msra.mxu0 %v570
        %669 = vmatprep.subr.bf16.mxu0 0
        %670 = vmatpush1.bf16.msra.mxu0 %v571
        %671 = vmatprep.subr.bf16.mxu0 0
        %672 = vmatpush1.bf16.msra.mxu0 %v572
        %673 = vmatprep.subr.bf16.mxu0 0
        %674 = vmatpush1.bf16.msra.mxu0 %v573
        %675 = vmatprep.subr.bf16.mxu0 0
        %676 = vmatpush1.bf16.msra.mxu0 %v574
        %677 = vmatprep.subr.bf16.mxu0 0
        %678 = vmatpush1.bf16.msra.mxu0 %v575
        %679 = vmatprep.subr.bf16.mxu0 0
        %680 = vmatpush1.bf16.msra.mxu0 %v576
        %681 = vmatprep.subr.bf16.mxu0 0
        %682 = vmatpush1.bf16.msra.mxu0 %v577
        %683 = vmatprep.mubr.bf16.mxu0 %v413
        %684 = vmatmul.mubr.bf16.gmra.mrb[0].mxu0 %v412
        %v685 = vpop.f32.mrb[0].mxu0
        %v686 = vadd.f32 %v645, %v685
        %v687 = vpop.f32.mrb[0].mxu0
        %v688 = vpop.f32.mrb[0].mxu0
        %v689 = vadd.f32 %v648, %v688
        %v690 = vpop.f32.mrb[0].mxu0
        %691 = vdwg.mxu0
        %v692 = vadd.f32 %v328, %v686
        %v693 = vadd.f32 %v329, %v689
        %694 = vst [vmem:[#allocation2] sm:$0xff] %v692
        %695 = vst [vmem:[#allocation2 + $0x8] sm:$0xff] %v693
        %p696 = scmp.eq.s32.totalorder %s30, 8
        // Predicated region
        $region57: #{_conv_pallas.1} parent=35 // pred_check
          %p697 = pneg %p696
        $region58: #{_conv_pallas.1} parent=35 // pred_check_branch
          %699 = sbr.rel (%p697) target = $region60
        $region59: #{_conv_pallas.1} parent=35 // pred_region
          %v700 = vld [vmem:[#allocation2] sm:$0xff]
          %v701 = vld [vmem:[#allocation2 + $0x8] sm:$0xff]
          %v702 = vld [vmem:[#allocation8] sm:$0x1]
          %v704 = vlaneseq
          %v705 = vshrl.u32 %v704, 7
          %v706 = vsub.s32 0, %v705
          %v707 = vrot.slane %v702, %v706
          %v709 = vmul.f32 %v700, %v707
          %v710 = vmul.f32 %v701, %v707
          %v711 = vld [vmem:[#allocation9] sm:$0x1]
          %v713 = vlaneseq
          %v714 = vshrl.u32 %v713, 7
          %v715 = vsub.s32 0, %v714
          %v716 = vrot.slane %v711, %v715
          %v718 = vadd.f32 %v709, %v716
          %v719 = vadd.f32 %v710, %v716
          %vm720 = vcmp.ge.f32.partialorder %v718, 0.0
          %vm721 = vcmp.ge.f32.partialorder %v719, 0.0
          %v722 = vmul.f32 %v718, 0.2
          %v723 = vmul.f32 %v719, 0.2
          %v724 = vsel %vm720, %v718, %v722
          %v725 = vsel %vm721, %v719, %v723
          %v726 = vpack.c.bf16 %v725, %v724
          %v728 = vunpack.c.l.b16 %v726
          %v729 = vunpack.c.h.b16 %v726
          %v730 = vpack.c.b16 %v728, %v728
          %v731 = vpack.c.b16 %v729, %v729
          %734 = vst [vmem:[#allocation11] sm:$0xf] %v730
          %735 = vst [vmem:[#allocation11 + $0x4] sm:$0xf] %v731
        $region60: #{_conv_pallas.1} parent=35 // pred_fallthru
          _
        // Predicated region
        $region61: #{_conv_pallas.1} parent=35 // pred_check
          %p736 = pneg %p170
        $region62: #{_conv_pallas.1} parent=35 // pred_check_branch
          %738 = sbr.rel (%p736) target = $region64
        $region63: #{_conv_pallas.1} parent=35 // pred_region
          %s739 = smul.u32 2, %s28
          %s741 = ssub.s32 128, 128
          %742 = vsyncadd [#allocation5], %s741
          %s743 = sadd.s32 %s29, %s739
          %s744 = smul.addr %s743, 64
          %s745 = scalar_lea.hbm %s4, %s744
          %s746 = sshll.u32 [#allocation11], 4
          %s747 = int_to_ptr.vmem [resolvable:$true] %s746
          %752 = dma.vmem_to_hbm [thread:$0]  %s747, 128, %s745, [#allocation5], 64, 64, 4
        $region64: #{_conv_pallas.1} parent=35 // pred_fallthru
          _
        // Predicated region
        $region65: #{_conv_pallas.1} parent=35 // pred_check
          %p753 = pneg %p170
        $region66: #{_conv_pallas.1} parent=35 // pred_check_branch
          %755 = sbr.rel (%p753) target = $region68
        $region67: #{_conv_pallas.1} parent=35 // pred_region
          %756 = dma.done [#allocation5], 128
        $region68: #{_conv_pallas.1} parent=35 // pred_fallthru
          _
      $region36: #{_conv_pallas.1} parent=5 // pred_fallthru
        _
      %p757 = scmp.le.s32.totalorder 2, %s18
      // Predicated region
      $region69: #{_conv_pallas.1} parent=5 // pred_check
        %p758 = pneg %p757
      $region70: #{_conv_pallas.1} parent=5 // pred_check_branch
        %760 = sbr.rel (%p758) target = $region72
      $region71: #{_conv_pallas.1} parent=5 // pred_region
        %s761 = ssub.s32 %s18, 2
      $region72: #{_conv_pallas.1} parent=5 // pred_fallthru
        _
    $region6: #{_conv_pallas.1} parent=1 // loop_footer
      %s22 = sadd.s32 1, %s18
    $region7: #{_conv_pallas.1} parent=1 // loop_footer_branch
      %17 = sbr.rel target = $region3
    $region8: #{_conv_pallas.1} parent=1 // loop_exit
      _
    %762 = vsyncpa [#allocation4], 1
    %s763 = scalar_lea.sflag [#allocation4], 1
    %764 = vsyncpa %s763, 1
    %765 = vsyncpa [#allocation7], 1
    %s766 = scalar_lea.sflag [#allocation7], 1
    %767 = vsyncpa %s766, 1
    %768 = vsyncpa [#allocation10], 1
    %769 = vsyncpa [#allocation5], 1
    %s770 = scalar_lea.sflag [#allocation5], 1
    %771 = vsyncpa %s770, 1

</llo_original>
